<compile_context>
chip_gen: v5e
topology: v5e:2x2
jax: 0.10.0
libtpu: 0.0.40
codegen_flags: <defaults>
</compile_context>

<pallas_src>
import functools
import math

import jax
import jax.numpy as jnp
from jax.experimental import pallas as pl
from jax.experimental.pallas import tpu as pltpu


# ----------------------------------------------------------------------------
# Tile selection helper: largest aligned divisor of `dim` that is <= target,
# falling back to the full dimension (always legal: block == full array dim).
# ----------------------------------------------------------------------------
def _pick_tile(dim, target, align):
    if dim <= target:
        return dim
    t = (target // align) * align
    while t >= align:
        if dim % t == 0:
            return t
        t -= align
    return dim


_VMEM_LIMIT = 48 * 1024 * 1024  # fits v7x's 64 MiB physical VMEM with headroom


# ----------------------------------------------------------------------------
# Kernel 1: fused Q/K/V projections  (y = x @ W_t + b, three at once)
# ----------------------------------------------------------------------------
def qkv_kernel(xq_ref, xk_ref, xv_ref, wq_ref, wk_ref, wv_ref,
               bq_ref, bk_ref, bv_ref, oq_ref, ok_ref, ov_ref,
               accq, acck, accv):
    @pl.when(pl.program_id(2) == 0)
    def _init():
        accq[...] = jnp.zeros_like(accq)
        acck[...] = jnp.zeros_like(acck)
        accv[...] = jnp.zeros_like(accv)

    accq[...] += jnp.dot(xq_ref[...], wq_ref[...],
                         preferred_element_type=jnp.float32)
    acck[...] += jnp.dot(xk_ref[...], wk_ref[...],
                         preferred_element_type=jnp.float32)
    accv[...] += jnp.dot(xv_ref[...], wv_ref[...],
                         preferred_element_type=jnp.float32)

    @pl.when(pl.program_id(2) == pl.num_programs(2) - 1)
    def _finalize():
        oq_ref[...] = (accq[...] + bq_ref[...]).astype(oq_ref.dtype)
        ok_ref[...] = (acck[...] + bk_ref[...]).astype(ok_ref.dtype)
        ov_ref[...] = (accv[...] + bv_ref[...]).astype(ov_ref.dtype)


def qkv_project(xq, xk, xv, wq_t, wk_t, wv_t, bq, bk, bv, out_dtype):
    """xq/xk/xv: (N, Din); w*_t: (Din, Dout) pre-transposed; b*: (Dout,)."""
    N, Din = xq.shape
    Dout = wq_t.shape[1]
    tm = _pick_tile(N, 256, 8)
    tn = _pick_tile(Dout, 256, 128)
    tk = _pick_tile(Din, 512, 128)
    grid = (N // tm, Dout // tn, Din // tk)

    x_spec = pl.BlockSpec((tm, tk), lambda i, j, kk: (i, kk))
    w_spec = pl.BlockSpec((tk, tn), lambda i, j, kk: (kk, j))
    b_spec = pl.BlockSpec((1, tn), lambda i, j, kk: (0, j))
    o_spec = pl.BlockSpec((tm, tn), lambda i, j, kk: (i, j))
    o_shape = jax.ShapeDtypeStruct((N, Dout), out_dtype)

    return pl.pallas_call(
        qkv_kernel,
        out_shape=(o_shape, o_shape, o_shape),
        grid=grid,
        in_specs=[x_spec, x_spec, x_spec,
                  w_spec, w_spec, w_spec,
                  b_spec, b_spec, b_spec],
        out_specs=(o_spec, o_spec, o_spec),
        scratch_shapes=[pltpu.VMEM((tm, tn), jnp.float32)] * 3,
        compiler_params=pltpu.CompilerParams(
            dimension_semantics=("parallel", "parallel", "arbitrary"),
            vmem_limit_bytes=_VMEM_LIMIT),
    )(xq, xk, xv, wq_t, wk_t, wv_t,
      bq.reshape(1, Dout), bk.reshape(1, Dout), bv.reshape(1, Dout))


# ----------------------------------------------------------------------------
# Kernel 2: tiled linear  y = x @ W_t + b  (used for the output projection wo)
# ----------------------------------------------------------------------------
def linear_kernel(x_ref, w_ref, b_ref, o_ref, acc_ref):
    @pl.when(pl.program_id(2) == 0)
    def _init():
        acc_ref[...] = jnp.zeros_like(acc_ref)

    acc_ref[...] += jnp.dot(x_ref[...], w_ref[...],
                            preferred_element_type=jnp.float32)

    @pl.when(pl.program_id(2) == pl.num_programs(2) - 1)
    def _finalize():
        o_ref[...] = (acc_ref[...] + b_ref[...]).astype(o_ref.dtype)


def linear(x2d, w_t, b, out_dtype):
    N, Din = x2d.shape
    Dout = w_t.shape[1]
    tm = _pick_tile(N, 256, 8)
    tn = _pick_tile(Dout, 256, 128)
    tk = _pick_tile(Din, 512, 128)
    grid = (N // tm, Dout // tn, Din // tk)

    return pl.pallas_call(
        linear_kernel,
        out_shape=jax.ShapeDtypeStruct((N, Dout), out_dtype),
        grid=grid,
        in_specs=[
            pl.BlockSpec((tm, tk), lambda i, j, kk: (i, kk)),
            pl.BlockSpec((tk, tn), lambda i, j, kk: (kk, j)),
            pl.BlockSpec((1, tn), lambda i, j, kk: (0, j)),
        ],
        out_specs=pl.BlockSpec((tm, tn), lambda i, j, kk: (i, j)),
        scratch_shapes=[pltpu.VMEM((tm, tn), jnp.float32)],
        compiler_params=pltpu.CompilerParams(
            dimension_semantics=("parallel", "parallel", "arbitrary"),
            vmem_limit_bytes=_VMEM_LIMIT),
    )(x2d, w_t, b.reshape(1, Dout))


# ----------------------------------------------------------------------------
# Kernel 3: scaled dot-product attention, all heads per block (lane-dense I/O)
# ----------------------------------------------------------------------------
def attn_kernel(q_ref, k_ref, v_ref, bias_ref, o_ref, aw_ref, *,
                num_heads, scale):
    q = q_ref[...]        # (tq, D)  all heads in columns
    k = k_ref[...]        # (S,  D)
    v = v_ref[...]        # (S,  D)
    bias = bias_ref[...]  # (tq, S)  already mask * -1e9, kept in f32

    depth = q.shape[-1] // num_heads
    outs = []
    for h in range(num_heads):                       # static unrolled loop
        sl = slice(h * depth, (h + 1) * depth)
        qh, kh, vh = q[:, sl], k[:, sl], v[:, sl]
        # Contract depth-vs-depth directly: no k transpose needed.
        logits = jax.lax.dot_general(
            qh, kh, (((1,), (1,)), ((), ())),
            preferred_element_type=jnp.float32) * scale
        logits = logits + bias
        logits = logits - jnp.max(logits, axis=-1, keepdims=True)
        p = jnp.exp(logits)
        p = p * pl.reciprocal(jnp.sum(p, axis=-1, keepdims=True))
        aw_ref[h] = p.astype(aw_ref.dtype)
        # Deliberate precision choice: P is cast to the value dtype for the
        # P@V matmul (f32 by default, bf16 if MXU operands are bf16).
        outs.append(jnp.dot(p.astype(vh.dtype), vh,
                            preferred_element_type=jnp.float32))

    # Single lane-dense store of the merged-head output (tq, D).
    o_ref[...] = jnp.concatenate(outs, axis=-1).astype(o_ref.dtype)


def sdpa(qp, kp, vp, bias, num_heads, out_dtype):
    """qp/kp/vp: (B, S, D) projected activations; bias: (B, S, S) additive."""
    B, S, D = qp.shape
    depth = D // num_heads
    tq = _pick_tile(S, 128, 8)
    grid = (B, S // tq)

    kernel = functools.partial(attn_kernel, num_heads=num_heads,
                               scale=1.0 / math.sqrt(depth))

    # TODO(synk): when attention_weights are not consumed, switch to a
    # flash-style (B, H, S/tq, S/tk) grid with online softmax so the (S, S)
    # weights never hit HBM.
    return pl.pallas_call(
        kernel,
        out_shape=(
            jax.ShapeDtypeStruct((B, S, D), out_dtype),
            jax.ShapeDtypeStruct((B, num_heads, S, S), jnp.float32),
        ),
        grid=grid,
        in_specs=[
            pl.BlockSpec((None, tq, D), lambda b, qi: (b, qi, 0)),
            pl.BlockSpec((None, S, D), lambda b, qi: (b, 0, 0)),
            pl.BlockSpec((None, S, D), lambda b, qi: (b, 0, 0)),
            pl.BlockSpec((None, tq, S), lambda b, qi: (b, qi, 0)),
        ],
        out_specs=(
            pl.BlockSpec((None, tq, D), lambda b, qi: (b, qi, 0)),
            pl.BlockSpec((None, num_heads, tq, S), lambda b, qi: (b, 0, qi, 0)),
        ),
        compiler_params=pltpu.CompilerParams(
            dimension_semantics=("parallel", "parallel"),
            vmem_limit_bytes=_VMEM_LIMIT),
    )(qp, kp, vp, bias)


# ----------------------------------------------------------------------------
# Full MultiHeadAttention forward
# ----------------------------------------------------------------------------
def multi_head_attention(params, v, k, q, mask, num_heads, use_bf16_mxu=False):
    """Matches the PyTorch module's forward(v, k, q, mask) -> (out, attn_w).

    use_bf16_mxu=True casts MXU operands (activations / weights / P) to bf16
    for v6e/v7x peak MXU rate while keeping softmax stats, mask bias and all
    accumulation in f32 (mask bias stays f32 so -1e9 never saturates).
    """
    B, S, D = q.shape
    out_dtype = q.dtype
    cdtype = jnp.bfloat16 if use_bf16_mxu else q.dtype

    # Pre-transpose weights ONCE outside the kernels so every GEMM is x @ W_t
    # with the contraction on the natural axes (no in-kernel XLU transpose).
    wq_t = params["wq_w"].T.astype(cdtype)
    wk_t = params["wk_w"].T.astype(cdtype)
    wv_t = params["wv_w"].T.astype(cdtype)
    wo_t = params["wo_w"].T.astype(cdtype)

    q2d = q.reshape(B * S, D).astype(cdtype)
    k2d = k.reshape(B * S, D).astype(cdtype)
    v2d = v.reshape(B * S, D).astype(cdtype)

    # Fused, tiled Q/K/V projections (one pallas_call, pipelined DMAs).
    qp, kp, vp = qkv_project(q2d, k2d, v2d, wq_t, wk_t, wv_t,
                             params["wq_b"], params["wk_b"], params["wv_b"],
                             out_dtype=cdtype)
    qp = qp.reshape(B, S, D)
    kp = kp.reshape(B, S, D)
    vp = vp.reshape(B, S, D)

    # Additive mask bias precomputed once per batch (shared across heads).
    if mask is None:
        bias = jnp.zeros((B, S, S), jnp.float32)
    else:
        bias = jnp.broadcast_to(mask.astype(jnp.float32) * (-1e9),
                                (B, 1, S, S)).reshape(B, S, S)

    # Attention: heads split/merged via column slices inside the kernel, output
    # written directly in (B, S, D) concat-head layout -> no wrapper transposes.
    attn_out, attn_weights = sdpa(qp, kp, vp, bias, num_heads, out_dtype=cdtype)

    out = linear(attn_out.reshape(B * S, D), wo_t, params["wo_b"],
                 out_dtype=out_dtype).reshape(B, S, D)
    return out, attn_weights


# ----------------------------------------------------------------------------
# Pure-JAX reference (mirrors the PyTorch code) for correctness checking
# ----------------------------------------------------------------------------
def reference_mha(params, v, k, q, mask, num_heads):
    B, S, D = q.shape
    depth = D // num_heads

    def lin(x, w, b):
        return x @ w.T + b

    def heads(x):
        return x.reshape(B, S, num_heads, depth).transpose(0, 2, 1, 3)

    qh = heads(lin(q, params["wq_w"], params["wq_b"]))
    kh = heads(lin(k, params["wk_w"], params["wk_b"]))
    vh = heads(lin(v, params["wv_w"], params["wv_b"]))

    logits = jnp.einsum("bhqd,bhkd->bhqk", qh, kh) / math.sqrt(depth)
    if mask is not None:
        logits = logits + mask * (-1e9)
    w = jax.nn.softmax(logits, axis=-1)
    out = jnp.einsum("bhqk,bhkd->bhqd", w, vh)
    out = out.transpose(0, 2, 1, 3).reshape(B, S, D)
    out = lin(out, params["wo_w"], params["wo_b"])
    return out, w


if __name__ == "__main__":
    # Small, TPU-friendly shapes consistent with the module (d_model % num_heads == 0)
    B, S, D, H = 2, 8, 32, 4

    key = jax.random.PRNGKey(0)
    keys = jax.random.split(key, 12)
    bound = 1.0 / math.sqrt(D)

    params = {
        "wq_w": jax.random.uniform(keys[0], (D, D), jnp.float32, -bound, bound),
        "wq_b": jax.random.uniform(keys[1], (D,), jnp.float32, -bound, bound),
        "wk_w": jax.random.uniform(keys[2], (D, D), jnp.float32, -bound, bound),
        "wk_b": jax.random.uniform(keys[3], (D,), jnp.float32, -bound, bound),
        "wv_w": jax.random.uniform(keys[4], (D, D), jnp.float32, -bound, bound),
        "wv_b": jax.random.uniform(keys[5], (D,), jnp.float32, -bound, bound),
        "wo_w": jax.random.uniform(keys[6], (D, D), jnp.float32, -bound, bound),
        "wo_b": jax.random.uniform(keys[7], (D,), jnp.float32, -bound, bound),
    }

    q = jax.random.normal(keys[8], (B, S, D), jnp.float32)
    k = jax.random.normal(keys[9], (B, S, D), jnp.float32)
    v = jax.random.normal(keys[10], (B, S, D), jnp.float32)
    # 0/1 causal-style mask, broadcast over heads: (B, 1, S, S)
    causal = 1.0 - jnp.tril(jnp.ones((S, S), jnp.float32))
    mask = jnp.broadcast_to(causal[None, None, :, :], (B, 1, S, S))

    out, attn_w = multi_head_attention(params, v, k, q, mask, num_heads=H)
    out = jax.block_until_ready(out)
    attn_w = jax.block_until_ready(attn_w)

    ref_out, ref_w = reference_mha(params, v, k, q, mask, num_heads=H)
    assert out.shape == (B, S, D) and attn_w.shape == (B, H, S, S)
    assert jnp.allclose(out, ref_out, atol=1e-4, rtol=1e-4)
    assert jnp.allclose(attn_w, ref_w, atol=1e-5, rtol=1e-5)

    print("KERNEL_OK")
</pallas_src>

<mosaic_0001>
module attributes {stable_mosaic.version = 11 : i64} {
  func.func @qkv_kernel(%arg0: i32, %arg1: i32, %arg2: i32, %arg3: memref<16x32xf32, #tpu.memory_space<vmem>>, %arg4: memref<16x32xf32, #tpu.memory_space<vmem>>, %arg5: memref<16x32xf32, #tpu.memory_space<vmem>>, %arg6: memref<32x32xf32, #tpu.memory_space<vmem>>, %arg7: memref<32x32xf32, #tpu.memory_space<vmem>>, %arg8: memref<32x32xf32, #tpu.memory_space<vmem>>, %arg9: memref<1x32xf32, #tpu.memory_space<vmem>>, %arg10: memref<1x32xf32, #tpu.memory_space<vmem>>, %arg11: memref<1x32xf32, #tpu.memory_space<vmem>>, %arg12: memref<16x32xf32, #tpu.memory_space<vmem>>, %arg13: memref<16x32xf32, #tpu.memory_space<vmem>>, %arg14: memref<16x32xf32, #tpu.memory_space<vmem>>, %arg15: memref<16x32xf32, #tpu.memory_space<vmem>>, %arg16: memref<16x32xf32, #tpu.memory_space<vmem>>, %arg17: memref<16x32xf32, #tpu.memory_space<vmem>>) attributes {dimension_semantics = [#tpu.dimension_semantics<parallel>, #tpu.dimension_semantics<parallel>, #tpu.dimension_semantics<arbitrary>], iteration_bounds = array<i64: 1, 1, 1>, scalar_prefetch = 0 : i64, scratch_operands = 3 : i64, tpu.core_type = #tpu.core_type<tc>, window_params = [{transform_indices = @transform_0, window_bounds = array<i64: 16, 32>}, {transform_indices = @transform_1, window_bounds = array<i64: 16, 32>}, {transform_indices = @transform_2, window_bounds = array<i64: 16, 32>}, {transform_indices = @transform_3, window_bounds = array<i64: 32, 32>}, {transform_indices = @transform_4, window_bounds = array<i64: 32, 32>}, {transform_indices = @transform_5, window_bounds = array<i64: 32, 32>}, {transform_indices = @transform_6, window_bounds = array<i64: 1, 32>}, {transform_indices = @transform_7, window_bounds = array<i64: 1, 32>}, {transform_indices = @transform_8, window_bounds = array<i64: 1, 32>}, {transform_indices = @transform_9, window_bounds = array<i64: 16, 32>}, {transform_indices = @transform_10, window_bounds = array<i64: 16, 32>}, {transform_indices = @transform_11, window_bounds = array<i64: 16, 32>}]} {
    %c0_i32 = arith.constant 0 : i32
    %0 = arith.cmpi eq, %arg2, %c0_i32 : i32
    %1 = arith.extui %0 : i1 to i32
    %c0_i32_0 = arith.constant 0 : i32
    %2 = arith.cmpi ne, %1, %c0_i32_0 : i32
    scf.if %2 {
      %cst_28 = arith.constant 0.000000e+00 : f32
      %24 = vector.broadcast %cst_28 : f32 to vector<16x32xf32>
      %c0_29 = arith.constant 0 : index
      %c0_30 = arith.constant 0 : index
      %25 = vector.load %arg15[%c0_29, %c0_30] : memref<16x32xf32, #tpu.memory_space<vmem>>, vector<16x32xf32>
      tpu.vector_store %arg15[%c0_29, %c0_30], %24 {strides = array<i32>} : memref<16x32xf32, #tpu.memory_space<vmem>>, vector<16x32xf32>,
      %cst_31 = arith.constant 0.000000e+00 : f32
      %26 = vector.broadcast %cst_31 : f32 to vector<16x32xf32>
      %c0_32 = arith.constant 0 : index
      %c0_33 = arith.constant 0 : index
      %27 = vector.load %arg16[%c0_32, %c0_33] : memref<16x32xf32, #tpu.memory_space<vmem>>, vector<16x32xf32>
      tpu.vector_store %arg16[%c0_32, %c0_33], %26 {strides = array<i32>} : memref<16x32xf32, #tpu.memory_space<vmem>>, vector<16x32xf32>,
      %cst_34 = arith.constant 0.000000e+00 : f32
      %28 = vector.broadcast %cst_34 : f32 to vector<16x32xf32>
      %c0_35 = arith.constant 0 : index
      %c0_36 = arith.constant 0 : index
      %29 = vector.load %arg17[%c0_35, %c0_36] : memref<16x32xf32, #tpu.memory_space<vmem>>, vector<16x32xf32>
      tpu.vector_store %arg17[%c0_35, %c0_36], %28 {strides = array<i32>} : memref<16x32xf32, #tpu.memory_space<vmem>>, vector<16x32xf32>,
    } else {
    }
    %c0 = arith.constant 0 : index
    %c0_1 = arith.constant 0 : index
    %3 = vector.load %arg15[%c0, %c0_1] : memref<16x32xf32, #tpu.memory_space<vmem>>, vector<16x32xf32>
    %c0_2 = arith.constant 0 : index
    %c0_3 = arith.constant 0 : index
    %4 = vector.load %arg3[%c0_2, %c0_3] : memref<16x32xf32, #tpu.memory_space<vmem>>, vector<16x32xf32>
    %c0_4 = arith.constant 0 : index
    %c0_5 = arith.constant 0 : index
    %5 = vector.load %arg6[%c0_4, %c0_5] : memref<32x32xf32, #tpu.memory_space<vmem>>, vector<32x32xf32>
    %cst = arith.constant dense<0.000000e+00> : vector<16x32xf32>
    %6 = tpu.matmul %4, %5, %cst {dimension_numbers = #tpu.dot_dimension_numbers<[1], [0], [0], [1], [0, 0, 1, 1], [], []>} : vector<16x32xf32>, vector<32x32xf32>, vector<16x32xf32> -> vector<16x32xf32>
    %7 = arith.addf %3, %6 : vector<16x32xf32>
    %c0_6 = arith.constant 0 : index
    %c0_7 = arith.constant 0 : index
    %8 = vector.load %arg15[%c0_6, %c0_7] : memref<16x32xf32, #tpu.memory_space<vmem>>, vector<16x32xf32>
    tpu.vector_store %arg15[%c0_6, %c0_7], %7 {strides = array<i32>} : memref<16x32xf32, #tpu.memory_space<vmem>>, vector<16x32xf32>,
    %c0_8 = arith.constant 0 : index
    %c0_9 = arith.constant 0 : index
    %9 = vector.load %arg16[%c0_8, %c0_9] : memref<16x32xf32, #tpu.memory_space<vmem>>, vector<16x32xf32>
    %c0_10 = arith.constant 0 : index
    %c0_11 = arith.constant 0 : index
    %10 = vector.load %arg4[%c0_10, %c0_11] : memref<16x32xf32, #tpu.memory_space<vmem>>, vector<16x32xf32>
    %c0_12 = arith.constant 0 : index
    %c0_13 = arith.constant 0 : index
    %11 = vector.load %arg7[%c0_12, %c0_13] : memref<32x32xf32, #tpu.memory_space<vmem>>, vector<32x32xf32>
    %cst_14 = arith.constant dense<0.000000e+00> : vector<16x32xf32>
    %12 = tpu.matmul %10, %11, %cst_14 {dimension_numbers = #tpu.dot_dimension_numbers<[1], [0], [0], [1], [0, 0, 1, 1], [], []>} : vector<16x32xf32>, vector<32x32xf32>, vector<16x32xf32> -> vector<16x32xf32>
    %13 = arith.addf %9, %12 : vector<16x32xf32>
    %c0_15 = arith.constant 0 : index
    %c0_16 = arith.constant 0 : index
    %14 = vector.load %arg16[%c0_15, %c0_16] : memref<16x32xf32, #tpu.memory_space<vmem>>, vector<16x32xf32>
    tpu.vector_store %arg16[%c0_15, %c0_16], %13 {strides = array<i32>} : memref<16x32xf32, #tpu.memory_space<vmem>>, vector<16x32xf32>,
    %c0_17 = arith.constant 0 : index
    %c0_18 = arith.constant 0 : index
    %15 = vector.load %arg17[%c0_17, %c0_18] : memref<16x32xf32, #tpu.memory_space<vmem>>, vector<16x32xf32>
    %c0_19 = arith.constant 0 : index
    %c0_20 = arith.constant 0 : index
    %16 = vector.load %arg5[%c0_19, %c0_20] : memref<16x32xf32, #tpu.memory_space<vmem>>, vector<16x32xf32>
    %c0_21 = arith.constant 0 : index
    %c0_22 = arith.constant 0 : index
    %17 = vector.load %arg8[%c0_21, %c0_22] : memref<32x32xf32, #tpu.memory_space<vmem>>, vector<32x32xf32>
    %cst_23 = arith.constant dense<0.000000e+00> : vector<16x32xf32>
    %18 = tpu.matmul %16, %17, %cst_23 {dimension_numbers = #tpu.dot_dimension_numbers<[1], [0], [0], [1], [0, 0, 1, 1], [], []>} : vector<16x32xf32>, vector<32x32xf32>, vector<16x32xf32> -> vector<16x32xf32>
    %19 = arith.addf %15, %18 : vector<16x32xf32>
    %c0_24 = arith.constant 0 : index
    %c0_25 = arith.constant 0 : index
    %20 = vector.load %arg17[%c0_24, %c0_25] : memref<16x32xf32, #tpu.memory_space<vmem>>, vector<16x32xf32>
    tpu.vector_store %arg17[%c0_24, %c0_25], %19 {strides = array<i32>} : memref<16x32xf32, #tpu.memory_space<vmem>>, vector<16x32xf32>,
    %c0_i32_26 = arith.constant 0 : i32
    %21 = arith.cmpi eq, %arg2, %c0_i32_26 : i32
    %22 = arith.extui %21 : i1 to i32
    %c0_i32_27 = arith.constant 0 : i32
    %23 = arith.cmpi ne, %22, %c0_i32_27 : i32
    scf.if %23 {
      %c0_28 = arith.constant 0 : index
      %c0_29 = arith.constant 0 : index
      %24 = vector.load %arg15[%c0_28, %c0_29] : memref<16x32xf32, #tpu.memory_space<vmem>>, vector<16x32xf32>
      %c0_30 = arith.constant 0 : index
      %c0_31 = arith.constant 0 : index
      %25 = vector.load %arg9[%c0_30, %c0_31] : memref<1x32xf32, #tpu.memory_space<vmem>>, vector<1x32xf32>
      %26 = vector.broadcast %25 : vector<1x32xf32> to vector<16x32xf32>
      %27 = arith.addf %24, %26 : vector<16x32xf32>
      %c0_32 = arith.constant 0 : index
      %c0_33 = arith.constant 0 : index
      %28 = vector.load %arg12[%c0_32, %c0_33] : memref<16x32xf32, #tpu.memory_space<vmem>>, vector<16x32xf32>
      tpu.vector_store %arg12[%c0_32, %c0_33], %27 {strides = array<i32>} : memref<16x32xf32, #tpu.memory_space<vmem>>, vector<16x32xf32>,
      %c0_34 = arith.constant 0 : index
      %c0_35 = arith.constant 0 : index
      %29 = vector.load %arg16[%c0_34, %c0_35] : memref<16x32xf32, #tpu.memory_space<vmem>>, vector<16x32xf32>
      %c0_36 = arith.constant 0 : index
      %c0_37 = arith.constant 0 : index
      %30 = vector.load %arg10[%c0_36, %c0_37] : memref<1x32xf32, #tpu.memory_space<vmem>>, vector<1x32xf32>
      %31 = vector.broadcast %30 : vector<1x32xf32> to vector<16x32xf32>
      %32 = arith.addf %29, %31 : vector<16x32xf32>
      %c0_38 = arith.constant 0 : index
      %c0_39 = arith.constant 0 : index
      %33 = vector.load %arg13[%c0_38, %c0_39] : memref<16x32xf32, #tpu.memory_space<vmem>>, vector<16x32xf32>
      tpu.vector_store %arg13[%c0_38, %c0_39], %32 {strides = array<i32>} : memref<16x32xf32, #tpu.memory_space<vmem>>, vector<16x32xf32>,
      %c0_40 = arith.constant 0 : index
      %c0_41 = arith.constant 0 : index
      %34 = vector.load %arg17[%c0_40, %c0_41] : memref<16x32xf32, #tpu.memory_space<vmem>>, vector<16x32xf32>
      %c0_42 = arith.constant 0 : index
      %c0_43 = arith.constant 0 : index
      %35 = vector.load %arg11[%c0_42, %c0_43] : memref<1x32xf32, #tpu.memory_space<vmem>>, vector<1x32xf32>
      %36 = vector.broadcast %35 : vector<1x32xf32> to vector<16x32xf32>
      %37 = arith.addf %34, %36 : vector<16x32xf32>
      %c0_44 = arith.constant 0 : index
      %c0_45 = arith.constant 0 : index
      %38 = vector.load %arg14[%c0_44, %c0_45] : memref<16x32xf32, #tpu.memory_space<vmem>>, vector<16x32xf32>
      tpu.vector_store %arg14[%c0_44, %c0_45], %37 {strides = array<i32>} : memref<16x32xf32, #tpu.memory_space<vmem>>, vector<16x32xf32>,
    } else {
    }
    return
  }
  func.func @transform_0(%arg0: i32, %arg1: i32, %arg2: i32) -> (i32, i32) {
    %c0_i32 = arith.constant 0 : i32
    return %arg0, %arg2 : i32, i32
  }
  func.func @transform_1(%arg0: i32, %arg1: i32, %arg2: i32) -> (i32, i32) {
    %c0_i32 = arith.constant 0 : i32
    return %arg0, %arg2 : i32, i32
  }
  func.func @transform_2(%arg0: i32, %arg1: i32, %arg2: i32) -> (i32, i32) {
    %c0_i32 = arith.constant 0 : i32
    return %arg0, %arg2 : i32, i32
  }
  func.func @transform_3(%arg0: i32, %arg1: i32, %arg2: i32) -> (i32, i32) {
    %c0_i32 = arith.constant 0 : i32
    return %arg2, %arg1 : i32, i32
  }
  func.func @transform_4(%arg0: i32, %arg1: i32, %arg2: i32) -> (i32, i32) {
    %c0_i32 = arith.constant 0 : i32
    return %arg2, %arg1 : i32, i32
  }
  func.func @transform_5(%arg0: i32, %arg1: i32, %arg2: i32) -> (i32, i32) {
    %c0_i32 = arith.constant 0 : i32
    return %arg2, %arg1 : i32, i32
  }
  func.func @transform_6(%arg0: i32, %arg1: i32, %arg2: i32) -> (i32, i32) {
    %c0_i32 = arith.constant 0 : i32
    %c0_i32_0 = arith.constant 0 : i32
    return %c0_i32, %arg1 : i32, i32
  }
  func.func @transform_7(%arg0: i32, %arg1: i32, %arg2: i32) -> (i32, i32) {
    %c0_i32 = arith.constant 0 : i32
    %c0_i32_0 = arith.constant 0 : i32
    return %c0_i32, %arg1 : i32, i32
  }
  func.func @transform_8(%arg0: i32, %arg1: i32, %arg2: i32) -> (i32, i32) {
    %c0_i32 = arith.constant 0 : i32
    %c0_i32_0 = arith.constant 0 : i32
    return %c0_i32, %arg1 : i32, i32
  }
  func.func @transform_9(%arg0: i32, %arg1: i32, %arg2: i32) -> (i32, i32) {
    %c0_i32 = arith.constant 0 : i32
    return %arg0, %arg1 : i32, i32
  }
  func.func @transform_10(%arg0: i32, %arg1: i32, %arg2: i32) -> (i32, i32) {
    %c0_i32 = arith.constant 0 : i32
    return %arg0, %arg1 : i32, i32
  }
  func.func @transform_11(%arg0: i32, %arg1: i32, %arg2: i32) -> (i32, i32) {
    %c0_i32 = arith.constant 0 : i32
    return %arg0, %arg1 : i32, i32
  }
}

</mosaic_0001>

<llo_original>
// kernel: tpu_custom_call.1
$region0: #{tpu_custom_call.1}
  #allocation0 [shape = 'u32[]', space=smem, size = 0x4, offset = 0x4, fixed_abs, tag = 'smem constant byte address 0x4 - core index']
  #allocation1 [shape = 'u32[72,128]{1,0:T(1,128)}', space=vmem, size = 0x9000, scoped, tag = 'internal scratch']
  #allocation2 [shape = 'f32[16,32]{1,0:T(8,128)}', space=vmem, size = 0x2000, scoped, tag = 'scratch operand']
  #allocation3 [shape = 'f32[16,32]{1,0:T(8,128)}', space=vmem, size = 0x2000, scoped, tag = 'scratch operand']
  #allocation4 [shape = 'f32[16,32]{1,0:T(8,128)}', space=vmem, size = 0x2000, scoped, tag = 'scratch operand']
  %s0 = inlined_call_operand.hbm [shape: f32[16,32], index: 0, kind: input, shape index: {}]
  %s1 = inlined_call_operand.hbm [shape: f32[16,32], index: 1, kind: input, shape index: {}]
  %s2 = inlined_call_operand.hbm [shape: f32[16,32], index: 2, kind: input, shape index: {}]
  %s3 = inlined_call_operand.hbm [shape: f32[32,32], index: 3, kind: input, shape index: {}]
  %s4 = inlined_call_operand.hbm [shape: f32[32,32], index: 4, kind: input, shape index: {}]
  %s5 = inlined_call_operand.hbm [shape: f32[32,32], index: 5, kind: input, shape index: {}]
  %s6 = inlined_call_operand.vmem [shape: f32[1,32], index: 6, kind: input, shape index: {}]
  %s7 = inlined_call_operand.vmem [shape: f32[1,32], index: 7, kind: input, shape index: {}]
  %s8 = inlined_call_operand.vmem [shape: f32[1,32], index: 8, kind: input, shape index: {}]
  %s9 = inlined_call_operand.hbm [shape: f32[16,32], index: 9, kind: output, shape index: {0}]
  %s10 = inlined_call_operand.hbm [shape: f32[16,32], index: 10, kind: output, shape index: {1}]
  %s11 = inlined_call_operand.hbm [shape: f32[16,32], index: 11, kind: output, shape index: {2}]
  %12 = xla_tuple %s9, %s10, %s11
  %s13 = sld [smem:[#allocation0]]
  $region94: #{tpu_custom_call.1} parent=0
    _
  %s15 = ssub.s32 1, %s13
  %s16 = scalar_select 0, %s15, %s13
  $region1: #{tpu_custom_call.1} parent=0
    #allocation5 [shape = 'u8[8192]{0}', space=vmem, size = 0x2000, scoped, tag = 'input window, operand 0, single buffered']
    #allocation6 [shape = 's32[1]{0}', space=sflag, size = 0x4, scoped, tag = 'scoped memory for tpu_custom_call.1']
    #allocation7 [shape = 's32[1]{0}', space=sflag, size = 0x4, scoped, tag = 'scoped memory for tpu_custom_call.1']
    #allocation8 [shape = 'u8[8192]{0}', space=vmem, size = 0x2000, scoped, tag = 'input window, operand 1, single buffered']
    #allocation9 [shape = 's32[1]{0}', space=sflag, size = 0x4, scoped, tag = 'scoped memory for tpu_custom_call.1']
    #allocation10 [shape = 'u8[8192]{0}', space=vmem, size = 0x2000, scoped, tag = 'input window, operand 2, single buffered']
    #allocation11 [shape = 'u8[16384]{0}', space=vmem, size = 0x4000, scoped, tag = 'input window, operand 3, single buffered']
    #allocation12 [shape = 's32[1]{0}', space=sflag, size = 0x4, scoped, tag = 'scoped memory for tpu_custom_call.1']
    #allocation13 [shape = 'u8[16384]{0}', space=vmem, size = 0x4000, scoped, tag = 'input window, operand 4, single buffered']
    #allocation14 [shape = 'u8[16384]{0}', space=vmem, size = 0x4000, scoped, tag = 'input window, operand 5, single buffered']
    #allocation15 [shape = 's32[1]{0}', space=sflag, size = 0x4, scoped, tag = 'scoped memory for tpu_custom_call.1']
    #allocation16 [shape = 'u8[8192]{0}', space=vmem, size = 0x2000, scoped, tag = 'output window, operand 0, single buffered']
    #allocation17 [shape = 'u8[8192]{0}', space=vmem, size = 0x2000, scoped, tag = 'output window, operand 1, single buffered']
    #allocation18 [shape = 's32[1]{0}', space=sflag, size = 0x4, scoped, tag = 'scoped memory for tpu_custom_call.1']
    #allocation19 [shape = 'u8[8192]{0}', space=vmem, size = 0x2000, scoped, tag = 'output window, operand 2, single buffered']
    %17 = vsyncpa [#allocation6], 0
    %18 = vsyncpa [#allocation9], 0
    %19 = vsyncpa [#allocation12], 0
    %20 = vsyncpa [#allocation15], 0
    %21 = vsyncpa [#allocation7], 0
    %22 = vsyncpa [#allocation18], 0
    // Predicated region
    $region2: #{tpu_custom_call.1} parent=1 // pred_check
      _
    $region3: #{tpu_custom_call.1} parent=1 // pred_check_branch
      %24 = sbr.rel (0) target = $region5
    $region4: #{tpu_custom_call.1} parent=1 // pred_region
      %26 = vsyncadd [#allocation6], 0
      %s27 = sshll.u32 %s0, 4
      %s28 = int_to_ptr.hbm [resolvable:$true] %s27
      %s29 = sshll.u32 [#allocation5], 4
      %s30 = int_to_ptr.vmem [resolvable:$true] %s29
      %35 = dma.hbm_to_vmem [thread:$0]  %s28, 256, %s30, [#allocation6], 128, 128, 8
    $region5: #{tpu_custom_call.1} parent=1 // pred_fallthru
      _
    // Predicated region
    $region6: #{tpu_custom_call.1} parent=1 // pred_check
      _
    $region7: #{tpu_custom_call.1} parent=1 // pred_check_branch
      %37 = sbr.rel (0) target = $region9
    $region8: #{tpu_custom_call.1} parent=1 // pred_region
      %39 = vsyncadd [#allocation9], 0
      %s40 = sshll.u32 %s1, 4
      %s41 = int_to_ptr.hbm [resolvable:$true] %s40
      %s42 = sshll.u32 [#allocation8], 4
      %s43 = int_to_ptr.vmem [resolvable:$true] %s42
      %48 = dma.hbm_to_vmem [thread:$0]  %s41, 256, %s43, [#allocation9], 128, 128, 8
    $region9: #{tpu_custom_call.1} parent=1 // pred_fallthru
      _
    // Predicated region
    $region10: #{tpu_custom_call.1} parent=1 // pred_check
      _
    $region11: #{tpu_custom_call.1} parent=1 // pred_check_branch
      %50 = sbr.rel (0) target = $region13
    $region12: #{tpu_custom_call.1} parent=1 // pred_region
      %52 = vsyncadd [#allocation9], 0
      %s53 = sshll.u32 %s2, 4
      %s54 = int_to_ptr.hbm [resolvable:$true] %s53
      %s55 = sshll.u32 [#allocation10], 4
      %s56 = int_to_ptr.vmem [resolvable:$true] %s55
      %61 = dma.hbm_to_vmem [thread:$0]  %s54, 256, %s56, [#allocation9], 128, 128, 8
    $region13: #{tpu_custom_call.1} parent=1 // pred_fallthru
      _
    // Predicated region
    $region14: #{tpu_custom_call.1} parent=1 // pred_check
      _
    $region15: #{tpu_custom_call.1} parent=1 // pred_check_branch
      %63 = sbr.rel (0) target = $region17
    $region16: #{tpu_custom_call.1} parent=1 // pred_region
      %65 = vsyncadd [#allocation12], 0
      %s66 = sshll.u32 %s3, 4
      %s67 = int_to_ptr.hbm [resolvable:$true] %s66
      %s68 = sshll.u32 [#allocation11], 4
      %s69 = int_to_ptr.vmem [resolvable:$true] %s68
      %74 = dma.hbm_to_vmem [thread:$0]  %s67, 512, %s69, [#allocation12], 128, 128, 8
    $region17: #{tpu_custom_call.1} parent=1 // pred_fallthru
      _
    // Predicated region
    $region18: #{tpu_custom_call.1} parent=1 // pred_check
      _
    $region19: #{tpu_custom_call.1} parent=1 // pred_check_branch
      %76 = sbr.rel (0) target = $region21
    $region20: #{tpu_custom_call.1} parent=1 // pred_region
      %78 = vsyncadd [#allocation12], 0
      %s79 = sshll.u32 %s4, 4
      %s80 = int_to_ptr.hbm [resolvable:$true] %s79
      %s81 = sshll.u32 [#allocation13], 4
      %s82 = int_to_ptr.vmem [resolvable:$true] %s81
      %87 = dma.hbm_to_vmem [thread:$0]  %s80, 512, %s82, [#allocation12], 128, 128, 8
    $region21: #{tpu_custom_call.1} parent=1 // pred_fallthru
      _
    // Predicated region
    $region22: #{tpu_custom_call.1} parent=1 // pred_check
      _
    $region23: #{tpu_custom_call.1} parent=1 // pred_check_branch
      %89 = sbr.rel (0) target = $region25
    $region24: #{tpu_custom_call.1} parent=1 // pred_region
      %91 = vsyncadd [#allocation15], 0
      %s92 = sshll.u32 %s5, 4
      %s93 = int_to_ptr.hbm [resolvable:$true] %s92
      %s94 = sshll.u32 [#allocation14], 4
      %s95 = int_to_ptr.vmem [resolvable:$true] %s94
      %100 = dma.hbm_to_vmem [thread:$0]  %s93, 512, %s95, [#allocation15], 128, 128, 8
    $region25: #{tpu_custom_call.1} parent=1 // pred_fallthru
      _
    // Predicated region
    $region26: #{tpu_custom_call.1} parent=1 // pred_check
      _
    $region27: #{tpu_custom_call.1} parent=1 // pred_check_branch
      %102 = sbr.rel (0) target = $region29
    $region28: #{tpu_custom_call.1} parent=1 // pred_region
      _
    $region29: #{tpu_custom_call.1} parent=1 // pred_fallthru
      _
    // Predicated region
    $region30: #{tpu_custom_call.1} parent=1 // pred_check
      _
    $region31: #{tpu_custom_call.1} parent=1 // pred_check_branch
      %104 = sbr.rel (0) target = $region33
    $region32: #{tpu_custom_call.1} parent=1 // pred_region
      _
    $region33: #{tpu_custom_call.1} parent=1 // pred_fallthru
      _
    // Predicated region
    $region34: #{tpu_custom_call.1} parent=1 // pred_check
      _
    $region35: #{tpu_custom_call.1} parent=1 // pred_check_branch
      %106 = sbr.rel (0) target = $region37
    $region36: #{tpu_custom_call.1} parent=1 // pred_region
      _
    $region37: #{tpu_custom_call.1} parent=1 // pred_fallthru
      _
    // Predicated region
    $region38: #{tpu_custom_call.1} parent=1 // pred_check
      _
    $region39: #{tpu_custom_call.1} parent=1 // pred_check_branch
      %108 = sbr.rel (0) target = $region41
    $region40: #{tpu_custom_call.1} parent=1 // pred_region
      %110 = dma.done [#allocation6], 256
    $region41: #{tpu_custom_call.1} parent=1 // pred_fallthru
      _
    // Predicated region
    $region42: #{tpu_custom_call.1} parent=1 // pred_check
      _
    $region43: #{tpu_custom_call.1} parent=1 // pred_check_branch
      %112 = sbr.rel (0) target = $region45
    $region44: #{tpu_custom_call.1} parent=1 // pred_region
      %114 = dma.done [#allocation9], 256
    $region45: #{tpu_custom_call.1} parent=1 // pred_fallthru
      _
    // Predicated region
    $region46: #{tpu_custom_call.1} parent=1 // pred_check
      _
    $region47: #{tpu_custom_call.1} parent=1 // pred_check_branch
      %116 = sbr.rel (0) target = $region49
    $region48: #{tpu_custom_call.1} parent=1 // pred_region
      %118 = dma.done [#allocation9], 256
    $region49: #{tpu_custom_call.1} parent=1 // pred_fallthru
      _
    // Predicated region
    $region50: #{tpu_custom_call.1} parent=1 // pred_check
      _
    $region51: #{tpu_custom_call.1} parent=1 // pred_check_branch
      %120 = sbr.rel (0) target = $region53
    $region52: #{tpu_custom_call.1} parent=1 // pred_region
      %122 = dma.done [#allocation12], 512
    $region53: #{tpu_custom_call.1} parent=1 // pred_fallthru
      _
    // Predicated region
    $region54: #{tpu_custom_call.1} parent=1 // pred_check
      _
    $region55: #{tpu_custom_call.1} parent=1 // pred_check_branch
      %124 = sbr.rel (0) target = $region57
    $region56: #{tpu_custom_call.1} parent=1 // pred_region
      %126 = dma.done [#allocation12], 512
    $region57: #{tpu_custom_call.1} parent=1 // pred_fallthru
      _
    // Predicated region
    $region58: #{tpu_custom_call.1} parent=1 // pred_check
      _
    $region59: #{tpu_custom_call.1} parent=1 // pred_check_branch
      %128 = sbr.rel (0) target = $region61
    $region60: #{tpu_custom_call.1} parent=1 // pred_region
      %130 = dma.done [#allocation15], 512
    $region61: #{tpu_custom_call.1} parent=1 // pred_fallthru
      _
    %p131 = scmp.eq.s32.totalorder 0, 0
    // Predicated region
    $region62: #{tpu_custom_call.1} parent=1 // pred_check
      %p132 = pneg %p131
    $region63: #{tpu_custom_call.1} parent=1 // pred_check_branch
      %134 = sbr.rel (%p132) target = $region65
    $region64: #{tpu_custom_call.1} parent=1 // pred_region
      %vm135 = vcmask 261120
      %136 = vst.msk [vmem:[#allocation2] sm:$0xff] %vm135, 0.0
      %137 = vst.msk [vmem:[#allocation2 + $0x8] sm:$0xff] %vm135, 0.0
      %138 = vst.msk [vmem:[#allocation3] sm:$0xff] %vm135, 0.0
      %139 = vst.msk [vmem:[#allocation3 + $0x8] sm:$0xff] %vm135, 0.0
      %140 = vst.msk [vmem:[#allocation4] sm:$0xff] %vm135, 0.0
      %141 = vst.msk [vmem:[#allocation4 + $0x8] sm:$0xff] %vm135, 0.0
    $region65: #{tpu_custom_call.1} parent=1 // pred_fallthru
      _
    %v142 = vld [vmem:[#allocation2] sm:$0xff]
    %v143 = vld [vmem:[#allocation2 + $0x8] sm:$0xff]
    %v144 = vld [vmem:[#allocation5] sm:$0xff]
    %v145 = vld [vmem:[#allocation5 + $0x8] sm:$0xff]
    %v146 = vld [vmem:[#allocation11] sm:$0xff]
    %v147 = vld [vmem:[#allocation11 + $0x8] sm:$0xff]
    %v148 = vld [vmem:[#allocation11 + $0x10] sm:$0xff]
    %v149 = vld [vmem:[#allocation11 + $0x18] sm:$0xff]
    %vm150 = vcmask 261120
    %v152 = vsel %vm150, %v144, 0
    %v155 = vsel %vm150, %v145, 0
    %157 = vmatpush.msra.mxu0 0.0
    %158 = vmatpush.msra.mxu0 0.0
    %159 = vmatpush.msra.mxu0 0.0
    %160 = vmatpush.msra.mxu0 0.0
    %161 = vmatpush.msra.mxu0 0.0
    %162 = vmatpush.msra.mxu0 0.0
    %163 = vmatpush.msra.mxu0 0.0
    %164 = vmatpush.msra.mxu0 0.0
    %165 = vmatpush.msra.mxu0 0.0
    %166 = vmatpush.msra.mxu0 0.0
    %167 = vmatpush.msra.mxu0 0.0
    %168 = vmatpush.msra.mxu0 0.0
    %169 = vmatpush.msra.mxu0 %v149
    %170 = vmatpush.msra.mxu0 %v148
    %171 = vmatpush.msra.mxu0 %v147
    %172 = vmatpush.msra.mxu0 %v146
    %173 = vmatmul.f32.gmra.mxu0 %v152
    %v174 = vpop.f32.mrf.mxu0
    %v175 = vadd.f32 0.0, %v174
    %176 = vmatmul.f32.gmra.mxu0 %v155
    %v177 = vpop.f32.mrf.mxu0
    %v178 = vadd.f32 0.0, %v177
    %179 = vdwg.mxu0
    %v180 = vadd.f32 %v142, %v175
    %v181 = vadd.f32 %v143, %v178
    %182 = vst.msk [vmem:[#allocation2] sm:$0xff] %vm150, %v180
    %183 = vst.msk [vmem:[#allocation2 + $0x8] sm:$0xff] %vm150, %v181
    %v184 = vld [vmem:[#allocation3] sm:$0xff]
    %v185 = vld [vmem:[#allocation3 + $0x8] sm:$0xff]
    %v186 = vld [vmem:[#allocation8] sm:$0xff]
    %v187 = vld [vmem:[#allocation8 + $0x8] sm:$0xff]
    %v188 = vld [vmem:[#allocation13] sm:$0xff]
    %v189 = vld [vmem:[#allocation13 + $0x8] sm:$0xff]
    %v190 = vld [vmem:[#allocation13 + $0x10] sm:$0xff]
    %v191 = vld [vmem:[#allocation13 + $0x18] sm:$0xff]
    %v193 = vsel %vm150, %v186, 0
    %v196 = vsel %vm150, %v187, 0
    %198 = vmatpush.msra.mxu0 0.0
    %199 = vmatpush.msra.mxu0 0.0
    %200 = vmatpush.msra.mxu0 0.0
    %201 = vmatpush.msra.mxu0 0.0
    %202 = vmatpush.msra.mxu0 0.0
    %203 = vmatpush.msra.mxu0 0.0
    %204 = vmatpush.msra.mxu0 0.0
    %205 = vmatpush.msra.mxu0 0.0
    %206 = vmatpush.msra.mxu0 0.0
    %207 = vmatpush.msra.mxu0 0.0
    %208 = vmatpush.msra.mxu0 0.0
    %209 = vmatpush.msra.mxu0 0.0
    %210 = vmatpush.msra.mxu0 %v191
    %211 = vmatpush.msra.mxu0 %v190
    %212 = vmatpush.msra.mxu0 %v189
    %213 = vmatpush.msra.mxu0 %v188
    %214 = vmatmul.f32.gmra.mxu0 %v193
    %v215 = vpop.f32.mrf.mxu0
    %v216 = vadd.f32 0.0, %v215
    %217 = vmatmul.f32.gmra.mxu0 %v196
    %v218 = vpop.f32.mrf.mxu0
    %v219 = vadd.f32 0.0, %v218
    %220 = vdwg.mxu0
    %v221 = vadd.f32 %v184, %v216
    %v222 = vadd.f32 %v185, %v219
    %223 = vst.msk [vmem:[#allocation3] sm:$0xff] %vm150, %v221
    %224 = vst.msk [vmem:[#allocation3 + $0x8] sm:$0xff] %vm150, %v222
    %v225 = vld [vmem:[#allocation4] sm:$0xff]
    %v226 = vld [vmem:[#allocation4 + $0x8] sm:$0xff]
    %v227 = vld [vmem:[#allocation10] sm:$0xff]
    %v228 = vld [vmem:[#allocation10 + $0x8] sm:$0xff]
    %v229 = vld [vmem:[#allocation14] sm:$0xff]
    %v230 = vld [vmem:[#allocation14 + $0x8] sm:$0xff]
    %v231 = vld [vmem:[#allocation14 + $0x10] sm:$0xff]
    %v232 = vld [vmem:[#allocation14 + $0x18] sm:$0xff]
    %v234 = vsel %vm150, %v227, 0
    %v237 = vsel %vm150, %v228, 0
    %239 = vmatpush.msra.mxu0 0.0
    %240 = vmatpush.msra.mxu0 0.0
    %241 = vmatpush.msra.mxu0 0.0
    %242 = vmatpush.msra.mxu0 0.0
    %243 = vmatpush.msra.mxu0 0.0
    %244 = vmatpush.msra.mxu0 0.0
    %245 = vmatpush.msra.mxu0 0.0
    %246 = vmatpush.msra.mxu0 0.0
    %247 = vmatpush.msra.mxu0 0.0
    %248 = vmatpush.msra.mxu0 0.0
    %249 = vmatpush.msra.mxu0 0.0
    %250 = vmatpush.msra.mxu0 0.0
    %251 = vmatpush.msra.mxu0 %v232
    %252 = vmatpush.msra.mxu0 %v231
    %253 = vmatpush.msra.mxu0 %v230
    %254 = vmatpush.msra.mxu0 %v229
    %255 = vmatmul.f32.gmra.mxu0 %v234
    %v256 = vpop.f32.mrf.mxu0
    %v257 = vadd.f32 0.0, %v256
    %258 = vmatmul.f32.gmra.mxu0 %v237
    %v259 = vpop.f32.mrf.mxu0
    %v260 = vadd.f32 0.0, %v259
    %261 = vdwg.mxu0
    %v262 = vadd.f32 %v225, %v257
    %v263 = vadd.f32 %v226, %v260
    %264 = vst.msk [vmem:[#allocation4] sm:$0xff] %vm150, %v262
    %265 = vst.msk [vmem:[#allocation4 + $0x8] sm:$0xff] %vm150, %v263
    // Predicated region
    $region66: #{tpu_custom_call.1} parent=1 // pred_check
      %p266 = pneg %p131
    $region67: #{tpu_custom_call.1} parent=1 // pred_check_branch
      %268 = sbr.rel (%p266) target = $region69
    $region68: #{tpu_custom_call.1} parent=1 // pred_region
      %v269 = vld [vmem:[#allocation2] sm:$0xff]
      %v270 = vld [vmem:[#allocation2 + $0x8] sm:$0xff]
      %v271 = vld [vmem:[%s6] sm:$0x1]
      %v273 = vperm.slane %v271, 0
      %v275 = vadd.f32 %v269, %v273
      %v276 = vadd.f32 %v270, %v273
      %277 = vst.msk [vmem:[#allocation16] sm:$0xff] %vm150, %v275
      %278 = vst.msk [vmem:[#allocation16 + $0x8] sm:$0xff] %vm150, %v276
      %v279 = vld [vmem:[#allocation3] sm:$0xff]
      %v280 = vld [vmem:[#allocation3 + $0x8] sm:$0xff]
      %v281 = vld [vmem:[%s7] sm:$0x1]
      %v283 = vperm.slane %v281, 0
      %v285 = vadd.f32 %v279, %v283
      %v286 = vadd.f32 %v280, %v283
      %287 = vst.msk [vmem:[#allocation17] sm:$0xff] %vm150, %v285
      %288 = vst.msk [vmem:[#allocation17 + $0x8] sm:$0xff] %vm150, %v286
      %v289 = vld [vmem:[#allocation4] sm:$0xff]
      %v290 = vld [vmem:[#allocation4 + $0x8] sm:$0xff]
      %v291 = vld [vmem:[%s8] sm:$0x1]
      %v293 = vperm.slane %v291, 0
      %v295 = vadd.f32 %v289, %v293
      %v296 = vadd.f32 %v290, %v293
      %297 = vst.msk [vmem:[#allocation19] sm:$0xff] %vm150, %v295
      %298 = vst.msk [vmem:[#allocation19 + $0x8] sm:$0xff] %vm150, %v296
    $region69: #{tpu_custom_call.1} parent=1 // pred_fallthru
      _
    // Predicated region
    $region70: #{tpu_custom_call.1} parent=1 // pred_check
      _
    $region71: #{tpu_custom_call.1} parent=1 // pred_check_branch
      %300 = sbr.rel (0) target = $region73
    $region72: #{tpu_custom_call.1} parent=1 // pred_region
      %302 = vsyncadd [#allocation7], 0
      %s303 = sshll.u32 [#allocation16], 4
      %s304 = int_to_ptr.vmem [resolvable:$true] %s303
      %s305 = sshll.u32 %s9, 4
      %s306 = int_to_ptr.hbm [resolvable:$true] %s305
      %311 = dma.vmem_to_hbm [thread:$0]  %s304, 256, %s306, [#allocation7], 128, 128, 8
    $region73: #{tpu_custom_call.1} parent=1 // pred_fallthru
      _
    // Predicated region
    $region74: #{tpu_custom_call.1} parent=1 // pred_check
      _
    $region75: #{tpu_custom_call.1} parent=1 // pred_check_branch
      %313 = sbr.rel (0) target = $region77
    $region76: #{tpu_custom_call.1} parent=1 // pred_region
      %315 = vsyncadd [#allocation18], 0
      %s316 = sshll.u32 [#allocation17], 4
      %s317 = int_to_ptr.vmem [resolvable:$true] %s316
      %s318 = sshll.u32 %s10, 4
      %s319 = int_to_ptr.hbm [resolvable:$true] %s318
      %324 = dma.vmem_to_hbm [thread:$0]  %s317, 256, %s319, [#allocation18], 128, 128, 8
    $region77: #{tpu_custom_call.1} parent=1 // pred_fallthru
      _
    // Predicated region
    $region78: #{tpu_custom_call.1} parent=1 // pred_check
      _
    $region79: #{tpu_custom_call.1} parent=1 // pred_check_branch
      %326 = sbr.rel (0) target = $region81
    $region80: #{tpu_custom_call.1} parent=1 // pred_region
      %328 = vsyncadd [#allocation18], 0
      %s329 = sshll.u32 [#allocation19], 4
      %s330 = int_to_ptr.vmem [resolvable:$true] %s329
      %s331 = sshll.u32 %s11, 4
      %s332 = int_to_ptr.hbm [resolvable:$true] %s331
      %337 = dma.vmem_to_hbm [thread:$0]  %s330, 256, %s332, [#allocation18], 128, 128, 8
    $region81: #{tpu_custom_call.1} parent=1 // pred_fallthru
      _
    // Predicated region
    $region82: #{tpu_custom_call.1} parent=1 // pred_check
      _
    $region83: #{tpu_custom_call.1} parent=1 // pred_check_branch
      %339 = sbr.rel (0) target = $region85
    $region84: #{tpu_custom_call.1} parent=1 // pred_region
      %341 = dma.done [#allocation7], 256
    $region85: #{tpu_custom_call.1} parent=1 // pred_fallthru
      _
    // Predicated region
    $region86: #{tpu_custom_call.1} parent=1 // pred_check
      _
    $region87: #{tpu_custom_call.1} parent=1 // pred_check_branch
      %343 = sbr.rel (0) target = $region89
    $region88: #{tpu_custom_call.1} parent=1 // pred_region
      %345 = dma.done [#allocation18], 256
    $region89: #{tpu_custom_call.1} parent=1 // pred_fallthru
      _
    // Predicated region
    $region90: #{tpu_custom_call.1} parent=1 // pred_check
      _
    $region91: #{tpu_custom_call.1} parent=1 // pred_check_branch
      %347 = sbr.rel (0) target = $region93
    $region92: #{tpu_custom_call.1} parent=1 // pred_region
      %349 = dma.done [#allocation18], 256
    $region93: #{tpu_custom_call.1} parent=1 // pred_fallthru
      _
    %350 = vsyncpa [#allocation6], 1
    %351 = vsyncpa [#allocation9], 1
    %352 = vsyncpa [#allocation12], 1
    %353 = vsyncpa [#allocation15], 1
    %354 = vsyncpa [#allocation7], 1
    %355 = vsyncpa [#allocation18], 1

</llo_original>
